<compile_context>
chip_gen: v7x
topology: tpu7x:2x2x1
jax: 0.10.0
libtpu: 0.0.40
codegen_flags: <defaults>
</compile_context>

<pallas_src>
import jax
import jax.numpy as jnp
import numpy as np
from jax.experimental import pallas as pl
from jax.experimental.pallas import tpu as pltpu


def _softmax_rows_kernel(x_ref, o_ref):
    # x_ref/o_ref: (TR, HW_pad) tile; softmax along the lane (last) axis.
    x = x_ref[...]
    if x.dtype == jnp.bfloat16:
        # bf16 VPU/EUP path (v6e/v7x): halves vreg pressure / cast work; only
        # the exp-sum is accumulated in f32.
        # TODO(synk): v5e has no bf16 VPU/EUP; a chip-version check could route
        # bf16 inputs through the f32 path there (still correct as written).
        m = jnp.max(x, axis=-1, keepdims=True)
        e = jnp.exp(x - m)
        s = jnp.sum(e.astype(jnp.float32), axis=-1, keepdims=True)
    else:
        xf = x.astype(jnp.float32)
        m = jnp.max(xf, axis=-1, keepdims=True)
        e = jnp.exp(xf - m)
        s = jnp.sum(e, axis=-1, keepdims=True)
    # Approx reciprocal runs on the EUP slot once per row; one Newton step on
    # the (TR, 1) vector restores near-full f32 accuracy for negligible cost.
    inv = pl.reciprocal(s, approx=True)
    inv = inv * (2.0 - s * inv)
    o_ref[...] = (e * inv).astype(o_ref.dtype)


def _vmem_limit_bytes():
    """~Half of physical VMEM: ≈64 MiB on v5e/v6e, ≈32 MiB on v7x."""
    try:
        cap = pltpu.get_tpu_info().vmem_capacity_bytes
    except Exception:
        cap = 128 * 1024 * 1024
    return int(cap) // 2


_VMEM_LIMIT = _vmem_limit_bytes()


def _pick_row_tile(rows, hw_padded, itemsize, budget_bytes):
    """Row-tile size from the VMEM budget; cdiv grid handles raggedness."""
    if rows <= 8:
        return rows  # block second-last dim equals the full array dim
    # Real per-row footprint: 2x input + 2x output double-buffers in the I/O
    # dtype plus ~2x f32 intermediates (x/e) inside the body.
    per_row = hw_padded * (4 * itemsize + 2 * 4)
    tr = max(8, (budget_bytes // per_row) // 8 * 8)
    # Guarantee >= 2 grid steps so the 'parallel' axis can split across
    # TensorCores (v7x) and the pipeline has work to overlap.
    half = (((rows + 1) // 2) + 7) // 8 * 8
    tr = min(tr, half)
    # Never larger than the rounded-up row count.
    tr = min(tr, (rows + 7) // 8 * 8)
    return tr


@jax.jit
def channel_norm(featmap):
    """featmap: (N, C, H, W) -> (N, C, H*W) softmax over the last dim."""
    N, C, H, W = featmap.shape
    HW = H * W
    R = N * C

    x2 = featmap.reshape(R, HW)  # free reshape (HW already contiguous in NCHW)

    # Pad lanes with -inf to the next multiple of 128 so output stores are
    # lane-dense; exp of the pad is exactly 0, leaving the softmax unchanged.
    HW_pad = ((HW + 127) // 128) * 128
    if HW_pad != HW:
        x2 = jnp.pad(x2, ((0, 0), (0, HW_pad - HW)),
                     constant_values=-jnp.inf)

    TR = _pick_row_tile(R, HW_pad, x2.dtype.itemsize,
                        budget_bytes=_VMEM_LIMIT // 2)

    out2 = pl.pallas_call(
        _softmax_rows_kernel,
        out_shape=jax.ShapeDtypeStruct((R, HW_pad), x2.dtype),
        grid_spec=pltpu.PrefetchScalarGridSpec(
            num_scalar_prefetch=0,
            grid=(pl.cdiv(R, TR),),
            in_specs=[pl.BlockSpec((TR, HW_pad), lambda i: (i, 0))],
            out_specs=pl.BlockSpec((TR, HW_pad), lambda i: (i, 0)),
        ),
        compiler_params=pltpu.CompilerParams(
            dimension_semantics=("parallel",),
            vmem_limit_bytes=_VMEM_LIMIT,
        ),
    )(x2)

    if HW_pad != HW:
        out2 = out2[:, :HW]
    return out2.reshape(N, C, HW)


def reference_channel_norm(featmap):
    N, C, H, W = featmap.shape
    return jax.nn.softmax(featmap.reshape(N, C, H * W), axis=-1)


if __name__ == "__main__":
    key = jax.random.PRNGKey(0)

    # Main case: aligned HW (16*16 = 256, multiple of 128).
    N, C, H, W = 2, 4, 16, 16
    featmap = jax.random.normal(key, (N, C, H, W), jnp.float32)
    out = jax.block_until_ready(channel_norm(featmap))
    ref = reference_channel_norm(featmap)
    np.testing.assert_allclose(np.asarray(out), np.asarray(ref),
                               rtol=2e-5, atol=2e-6)
    assert out.shape == (N, C, H * W)

    # Secondary case: odd spatial size (7x7 -> lane padding) and a ragged
    # row grid (R = 15 rows, tile of 8 -> 2 grid steps, last one partial).
    N2, C2, H2, W2 = 3, 5, 7, 7
    featmap2 = jax.random.normal(jax.random.PRNGKey(0), (N2, C2, H2, W2),
                                 jnp.float32)
    out2 = jax.block_until_ready(channel_norm(featmap2))
    ref2 = reference_channel_norm(featmap2)
    np.testing.assert_allclose(np.asarray(out2), np.asarray(ref2),
                               rtol=2e-5, atol=2e-6)
    assert out2.shape == (N2, C2, H2 * W2)

    print("KERNEL_OK")
</pallas_src>

<mosaic_0001>
module attributes {stable_mosaic.version = 11 : i64} {
  func.func @_softmax_rows_kernel(%arg0: i32, %arg1: memref<8x256xf32, #tpu.memory_space<vmem>>, %arg2: memref<8x256xf32, #tpu.memory_space<vmem>>) attributes {dimension_semantics = [#tpu.dimension_semantics<parallel>], iteration_bounds = array<i64: 1>, scalar_prefetch = 0 : i64, scratch_operands = 0 : i64, tpu.core_type = #tpu.core_type<tc>, window_params = [{transform_indices = @transform_0, window_bounds = array<i64: 8, 256>}, {transform_indices = @transform_1, window_bounds = array<i64: 8, 256>}]} {
    %c0 = arith.constant 0 : index
    %c0_0 = arith.constant 0 : index
    %0 = vector.load %arg1[%c0, %c0_0] : memref<8x256xf32, #tpu.memory_space<vmem>>, vector<8x256xf32>
    %cst = arith.constant dense<0xFF800000> : vector<8xf32>
    %1 = vector.multi_reduction <maximumf>, %0, %cst [1] : vector<8x256xf32> to vector<8xf32>
    %2 = vector.shape_cast %1 : vector<8xf32> to vector<8x1xf32>
    %3 = vector.broadcast %2 : vector<8x1xf32> to vector<8x256xf32>
    %4 = arith.subf %0, %3 : vector<8x256xf32>
    %5 = math.exp %4 : vector<8x256xf32>
    %cst_1 = arith.constant dense<0.000000e+00> : vector<8xf32>
    %6 = vector.multi_reduction <add>, %5, %cst_1 [1] : vector<8x256xf32> to vector<8xf32>
    %7 = vector.shape_cast %6 : vector<8xf32> to vector<8x1xf32>
    %8 = tpu.reciprocal %7 {approx = true} : vector<8x1xf32> -> vector<8x1xf32>
    %9 = arith.mulf %7, %8 : vector<8x1xf32>
    %cst_2 = arith.constant 2.000000e+00 : f32
    %10 = vector.broadcast %cst_2 : f32 to vector<8x1xf32>
    %11 = arith.subf %10, %9 : vector<8x1xf32>
    %12 = arith.mulf %8, %11 : vector<8x1xf32>
    %13 = vector.broadcast %12 : vector<8x1xf32> to vector<8x256xf32>
    %14 = arith.mulf %5, %13 : vector<8x256xf32>
    %c0_3 = arith.constant 0 : index
    %c0_4 = arith.constant 0 : index
    %15 = vector.load %arg2[%c0_3, %c0_4] : memref<8x256xf32, #tpu.memory_space<vmem>>, vector<8x256xf32>
    tpu.vector_store %arg2[%c0_3, %c0_4], %14 {strides = array<i32>} : memref<8x256xf32, #tpu.memory_space<vmem>>, vector<8x256xf32>,
    return
  }
  func.func @transform_0(%arg0: i32) -> (i32, i32) {
    %c0_i32 = arith.constant 0 : i32
    %c0_i32_0 = arith.constant 0 : i32
    return %arg0, %c0_i32 : i32, i32
  }
  func.func @transform_1(%arg0: i32) -> (i32, i32) {
    %c0_i32 = arith.constant 0 : i32
    %c0_i32_0 = arith.constant 0 : i32
    return %arg0, %c0_i32 : i32, i32
  }
}

</mosaic_0001>

<llo_original>
// kernel: channel_norm.1
$region0: #{channel_norm.1}
  #allocation0 [shape = 'u32[]', space=smem, size = 0x4, offset = 0x4, fixed_abs, tag = 'smem constant byte address 0x4 - core index']
  #allocation1 [shape = 'u32[144,128]{1,0:T(1,128)}', space=vmem, size = 0x12000, scoped, tag = 'internal scratch']
  %s0 = inlined_call_operand.hbm [shape: f32[8,256], index: 0, kind: input, shape index: {}]
  %s1 = inlined_call_operand.hbm [shape: f32[8,256], index: 1, kind: output, shape index: {}]
  %s2 = sld [smem:[#allocation0]]
  $region18: #{channel_norm.1} parent=0
    _
  %s4 = ssub.s32 1, %s2
  %s5 = scalar_select 0, %s4, %s2
  $region1: #{channel_norm.1} parent=0
    #allocation2 [shape = 'u8[8192]{0}', space=vmem, size = 0x2000, scoped, tag = 'input window, operand 0, single buffered']
    #allocation3 [shape = 's32[1]{0}', space=sflag, size = 0x4, scoped, tag = 'scoped memory for channel_norm.1']
    #allocation4 [shape = 's32[1]{0}', space=sflag, size = 0x4, scoped, tag = 'scoped memory for channel_norm.1']
    #allocation5 [shape = 'u8[8192]{0}', space=vmem, size = 0x2000, scoped, tag = 'output window, operand 0, single buffered']
    %6 = vsyncpa [#allocation3], 0
    %7 = vsyncpa [#allocation4], 0
    // Predicated region
    $region2: #{channel_norm.1} parent=1 // pred_check
      _
    $region3: #{channel_norm.1} parent=1 // pred_check_branch
      %9 = sbr.rel (0) target = $region5
    $region4: #{channel_norm.1} parent=1 // pred_region
      %s11 = ssub.s32 256, 256
      %12 = vsyncadd [#allocation3], %s11
      %s14 = sshll.u32 [#allocation2], 4
      %s15 = int_to_ptr.vmem [resolvable:$true] %s14
      %17 = dma.hbm_to_vmem [thread:$0]  %s0, 256, %s15, [#allocation3]
    $region5: #{channel_norm.1} parent=1 // pred_fallthru
      _
    // Predicated region
    $region6: #{channel_norm.1} parent=1 // pred_check
      _
    $region7: #{channel_norm.1} parent=1 // pred_check_branch
      %19 = sbr.rel (0) target = $region9
    $region8: #{channel_norm.1} parent=1 // pred_region
      %20 = dma.done [#allocation3], 256
    $region9: #{channel_norm.1} parent=1 // pred_fallthru
      _
    %v21 = vld [vmem:[#allocation2] sm:$0xff]
    %v22 = vld [vmem:[#allocation2 + $0x8] sm:$0xff]
    %v23 = vmax.f32 %v21, %v22
    %24 = vmax.xlane.f32.xlu0 %v23
    %v25 = vpop.xlane.xlu0 %24
    %v26 = vsub.f32 %v21, %v25
    %v27 = vsub.f32 %v22, %v25
    %v28 = vmul.f32 %v26, 1.442695
    %v29 = vpow.pop %v28
    %v30 = vmul.f32 %v27, 1.442695
    %v31 = vpow.pop %v30
    %v32 = vadd.f32 %v29, %v31
    %33 = vadd.xlane.f32.xlu0 %v32
    %v34 = vpop.xlane.xlu0 %33
    %v35 = vrcp.pop %v34
    %v36 = vmul.f32 %v34, %v35
    %v37 = vsub.f32 2.0, %v36
    %v38 = vmul.f32 %v35, %v37
    %v39 = vmul.f32 %v29, %v38
    %v40 = vmul.f32 %v31, %v38
    %41 = vst [vmem:[#allocation5] sm:$0xff] %v39
    %42 = vst [vmem:[#allocation5 + $0x8] sm:$0xff] %v40
    // Predicated region
    $region10: #{channel_norm.1} parent=1 // pred_check
      _
    $region11: #{channel_norm.1} parent=1 // pred_check_branch
      %44 = sbr.rel (0) target = $region13
    $region12: #{channel_norm.1} parent=1 // pred_region
      %s46 = ssub.s32 256, 256
      %47 = vsyncadd [#allocation4], %s46
      %s49 = sshll.u32 [#allocation5], 4
      %s50 = int_to_ptr.vmem [resolvable:$true] %s49
      %52 = dma.vmem_to_hbm [thread:$0]  %s50, 256, %s1, [#allocation4]
    $region13: #{channel_norm.1} parent=1 // pred_fallthru
      _
    // Predicated region
    $region14: #{channel_norm.1} parent=1 // pred_check
      _
    $region15: #{channel_norm.1} parent=1 // pred_check_branch
      %54 = sbr.rel (0) target = $region17
    $region16: #{channel_norm.1} parent=1 // pred_region
      %55 = dma.done [#allocation4], 256
    $region17: #{channel_norm.1} parent=1 // pred_fallthru
      _
    %56 = vsyncpa [#allocation3], 1
    %57 = vsyncpa [#allocation4], 1

</llo_original>
